<compile_context>
chip_gen: v7x
topology: tpu7x:2x2x1
jax: 0.10.0
libtpu: 0.0.40
codegen_flags: <defaults>
</compile_context>

<pallas_src>
import functools

import jax
import jax.numpy as jnp
from jax import lax
from jax.experimental import pallas as pl
from jax.experimental.pallas import tpu as pltpu


_LANES = 128


# ---------------------------------------------------------------------------
# Small in-kernel helpers (channel-unrolled; layout [bs, C, TR, 128]).
# ---------------------------------------------------------------------------
def _load_channels(x_ref, C):
    return [x_ref[:, i, :, :].astype(jnp.float32) for i in range(C)]


def _lorentz_dot(us, vs):
    """<u, v>_L = sum_{i>=1} u_i v_i - u_0 v_0 (channel-unrolled, pure VPU)."""
    acc = us[1] * vs[1]
    for i in range(2, len(us)):
        acc = acc + us[i] * vs[i]
    return acc - us[0] * vs[0]


def _dist_from_xm(xm, c):
    """Geodesic distance to mu from <mu, x>_L:  sqrt(c) * arccosh(-xm / c)."""
    sqrt_c = c ** 0.5
    z = jnp.maximum(xm * (-1.0 / c), 1.0 + 1e-7)
    return sqrt_c * jnp.log(z + jnp.sqrt(z * z - 1.0))


# ---------------------------------------------------------------------------
# Pass A: Frechet variance via the isometry shortcut (var = mean(dist)).
# Emits a per-tile partial sum of distances; finalize happens in the wrapper.
# ---------------------------------------------------------------------------
def _var_kernel(mu_ref, x_ref, part_ref, *, c, C, tile_rows, n_spatial, masked):
    xs = _load_channels(x_ref, C)
    mu = [mu_ref[0, i] for i in range(C)]

    xm = _lorentz_dot(mu, xs)                 # <mu, x>_L  [bs, TR, L]
    dist = _dist_from_xm(xm, c)               # geodesic distance to mu

    if masked:
        # Exclude zero-padded spatial positions (flat index = row*128 + lane).
        t = pl.program_id(0)
        row = lax.broadcasted_iota(jnp.int32, (tile_rows, _LANES), 0)
        lane = lax.broadcasted_iota(jnp.int32, (tile_rows, _LANES), 1)
        idx = (t * tile_rows + row) * _LANES + lane
        dist = jnp.where((idx < n_spatial)[None, :, :], dist, 0.0)

    part_ref[...] = jnp.sum(dist, axis=(0, 1))[None, None, :]


# ---------------------------------------------------------------------------
# Pass B: logmap at mu, transport mu->origin, rescale, transport origin->beta,
# expmap at beta.  Fully parallel over spatial tiles.
# ---------------------------------------------------------------------------
def _apply_kernel(mu_ref, beta_ref, scale_ref, x_ref, o_ref, *, c, C):
    sqrt_c = c ** 0.5
    inv_c = 1.0 / c

    scale = scale_ref[0, 0]
    beta = [beta_ref[i] for i in range(C)]
    inv_beta_den = beta_ref[C]                 # 1 / (c + sqrt_c * beta_0)
    mu = [mu_ref[0, i] for i in range(C)]
    inv_mu_den = mu_ref[0, C]                  # 1 / (c + sqrt_c * mu_0)

    xs = _load_channels(x_ref, C)

    # --- logmap at mu
    xm = _lorentz_dot(mu, xs)
    dist = _dist_from_xm(xm, c)
    t = xm * inv_c
    nom = [xs[i] + t * mu[i] for i in range(C)]
    nn = _lorentz_dot(nom, nom)
    s = dist * lax.rsqrt(jnp.maximum(nn, 1e-8))
    xt = [s * nom[i] for i in range(C)]

    # --- transp0back: mu -> origin
    coef = (xt[0] * (-sqrt_c)) * inv_mu_den
    xt = ([xt[0] + coef * mu[0] + coef * sqrt_c]
          + [xt[i] + coef * mu[i] for i in range(1, C)])

    # --- rescale in the tangent space at the origin
    xt = [scale * v for v in xt]

    # --- transp0: origin -> beta
    coef = _lorentz_dot(beta, xt) * inv_beta_den
    xt = ([xt[0] + coef * beta[0] + coef * sqrt_c]
          + [xt[i] + coef * beta[i] for i in range(1, C)])

    # --- expmap at beta
    u2 = jnp.maximum(_lorentz_dot(xt, xt), 1e-8)
    inv_u = lax.rsqrt(u2)
    u_norm = u2 * inv_u                        # = sqrt(u2)
    a = u_norm * (1.0 / sqrt_c)
    ea = jnp.exp(a)
    eia = jnp.exp(-a)                          # second EUP exp (VALU slot is the bottleneck)
    cosh_a = 0.5 * (ea + eia)
    sinh_f = (0.5 * sqrt_c) * (ea - eia) * inv_u   # sqrt_c * sinh(a) / ||u||
    for i in range(C):
        o_ref[:, i, :, :] = (cosh_a * beta[i] + sinh_f * xt[i]).astype(o_ref.dtype)


# ---------------------------------------------------------------------------
# Tiling: pad flattened spatial length to a multiple of 128, choose row tile.
# ---------------------------------------------------------------------------
def _choose_tiling(n_spatial, bs, C, itemsize, tile_rows=None,
                   vmem_block_budget=2 * 1024 * 1024):
    L = _LANES
    n_pad = ((n_spatial + L - 1) // L) * L
    R = n_pad // L
    bytes_per_row = bs * C * L * itemsize
    if R % 8 == 0:
        if (tile_rows is not None and R % tile_rows == 0 and tile_rows % 8 == 0):
            return n_pad, R, L, tile_rows
        for cand in (512, 256, 128, 64, 32, 16, 8):
            if R % cand == 0 and cand * bytes_per_row <= vmem_block_budget:
                return n_pad, R, L, cand
        return n_pad, R, L, 8
    # Small/awkward R: a single full-extent row block (allowed: equals full dim).
    return n_pad, R, L, R


# ---------------------------------------------------------------------------
# Wrapper: centroid in jnp, two Pallas passes, layout plumbing.
# ---------------------------------------------------------------------------
def lorentz_batchnorm2d(x, beta, gamma, *, c=1.0, eps=1e-5, tile_rows=None):
    """LorentzBatchNorm2d forward (training mode, space_method=False).

    x:     [bs, H, W, C] channels-last points on the Lorentz manifold.
    beta:  [C] learnable manifold mean, gamma: [1] learnable scale.
    """
    bs, h, w, C = x.shape
    n_spatial = h * w
    c = float(c)
    eps = float(eps)
    sqrt_c = c ** 0.5

    n_pad, R, L, TR = _choose_tiling(n_spatial, bs, C,
                                     jnp.dtype(x.dtype).itemsize, tile_rows)
    num_tiles = R // TR
    masked = (n_pad != n_spatial)

    x3 = x.reshape(bs, n_spatial, C)

    # ---- Lorentzian centroid mu: tiny reduction done with plain jnp (replaces
    #      the old streaming pass-1 kernel; saves one full HBM read of x).
    x3f = x3.astype(jnp.float32)

    def _self_linner(u):
        uv = u * u
        return jnp.sum(uv, axis=-1, keepdims=True) - 2.0 * uv[..., :1]

    avg1 = jnp.mean(x3f, axis=1)                                          # [bs, C]
    mean_b = (sqrt_c * avg1) / jnp.sqrt(jnp.maximum(jnp.abs(_self_linner(avg1)), 1e-8))
    avg2 = jnp.mean(mean_b, axis=0, keepdims=True)                        # [1, C]
    mu = (sqrt_c * avg2) / jnp.sqrt(jnp.maximum(jnp.abs(_self_linner(avg2)), 1e-8))
    mu_aux = jnp.concatenate([mu, 1.0 / (c + sqrt_c * mu[:, :1])], axis=-1)  # [1, C+1]

    # ---- lane-dense channel-major layout [bs, C, R, 128]
    # TODO(synk): this transpose is an extra HBM round-trip; keep activations
    #             channel-major upstream (or fuse with the consumer) to avoid it.
    if masked:
        x3 = jnp.pad(x3, ((0, 0), (0, n_pad - n_spatial), (0, 0)))
    x4 = x3.transpose(0, 2, 1).reshape(bs, C, R, L)

    tile_spec = pl.BlockSpec((bs, C, TR, L), lambda t: (0, 0, t, 0))
    smem = pl.BlockSpec(memory_space=pltpu.MemorySpace.SMEM)
    cparams = pltpu.CompilerParams(dimension_semantics=("parallel",),
                                   vmem_limit_bytes=32 * 1024 * 1024)

    # ---- pass A: Frechet variance via isometry shortcut (var = mean(dist)).
    partials = pl.pallas_call(
        functools.partial(_var_kernel, c=c, C=C, tile_rows=TR,
                          n_spatial=n_spatial, masked=masked),
        out_shape=jax.ShapeDtypeStruct((num_tiles, 1, L), jnp.float32),
        grid=(num_tiles,),
        in_specs=[smem, tile_spec],
        out_specs=pl.BlockSpec((1, 1, L), lambda t: (t, 0, 0)),
        compiler_params=cparams,
    )(mu_aux, x4)

    var = jnp.sum(partials) / (bs * n_spatial)
    gamma_f = jnp.asarray(gamma, jnp.float32).reshape(())
    scale = (gamma_f / (var + eps)).reshape(1, 1)

    beta_f = jnp.asarray(beta, jnp.float32).reshape(C)
    beta_aux = jnp.concatenate([beta_f, (1.0 / (c + sqrt_c * beta_f[0]))[None]])  # [C+1]

    # ---- pass B: logmap / transport / rescale / expmap (grid-parallel).
    out4 = pl.pallas_call(
        functools.partial(_apply_kernel, c=c, C=C),
        out_shape=jax.ShapeDtypeStruct((bs, C, R, L), x.dtype),
        grid=(num_tiles,),
        in_specs=[smem, smem, smem, tile_spec],
        out_specs=tile_spec,
        compiler_params=cparams,
    )(mu_aux, beta_aux, scale, x4)

    out3 = out4.reshape(bs, C, n_pad).transpose(0, 2, 1)
    if masked:
        out3 = out3[:, :n_spatial, :]
    return out3.reshape(bs, h, w, C)


# ---------------------------------------------------------------------------
# Pure-JAX reference of the identical module math (validates the Pallas path).
# ---------------------------------------------------------------------------
def _reference(x3, beta, gamma, *, c, eps):
    sqrt_c = c ** 0.5

    def linner(u, v):
        uv = u * v
        return jnp.sum(uv, axis=-1, keepdims=True) - 2.0 * uv[..., :1]

    C = x3.shape[-1]
    origin = jnp.zeros((C,), jnp.float32).at[0].set(sqrt_c)
    avg1 = jnp.mean(x3, axis=1)
    mean_b = sqrt_c * avg1 / jnp.sqrt(jnp.maximum(jnp.abs(-linner(avg1, avg1)), 1e-8))
    avg2 = jnp.mean(mean_b, axis=0, keepdims=True)
    mu = sqrt_c * avg2 / jnp.sqrt(jnp.maximum(jnp.abs(-linner(avg2, avg2)), 1e-8))
    xm = linner(mu, x3)
    z = jnp.maximum(-xm / c, 1.0 + 1e-7)
    dist = sqrt_c * jnp.log(z + jnp.sqrt(z * z - 1.0))
    nom = x3 + (xm / c) * mu
    x_t = dist * nom / jnp.sqrt(jnp.maximum(linner(nom, nom), 1e-8))
    coef = (-sqrt_c * x_t[..., :1]) / (c + sqrt_c * mu[..., :1])
    x_t = x_t + coef * (mu + origin)
    nrm = jnp.sqrt(jnp.sum(x_t * x_t, axis=-1, keepdims=True))
    var = jnp.mean(nrm)
    x_t = x_t * (gamma / (var + eps))
    coef = linner(beta, x_t) / (c + sqrt_c * beta[..., :1])
    x_t = x_t + coef * (origin + beta)
    u_norm = jnp.sqrt(jnp.maximum(linner(x_t, x_t), 1e-8))
    a = u_norm / sqrt_c
    return jnp.cosh(a) * beta + sqrt_c * jnp.sinh(a) * x_t / u_norm


if __name__ == "__main__":
    c = 1.0
    eps = 1e-5

    def make_points(key, bs, H, W, C):
        xs = 0.5 * jax.random.normal(key, (bs, H, W, C - 1), dtype=jnp.float32)
        x_time = jnp.sqrt(c + jnp.sum(xs * xs, axis=-1, keepdims=True))
        return jnp.concatenate([x_time, xs], axis=-1)

    # Deterministic parameters, exactly as in __init__:
    #   beta = manifold.origin = (sqrt(c), 0, ..., 0), gamma = 1
    C = 4
    beta = jnp.zeros((C,), jnp.float32).at[0].set(jnp.float32(c) ** 0.5)
    gamma = jnp.ones((1,), jnp.float32)

    # Primary small config (bs=2, H=W=16, C=4).
    bs, H, W = 2, 16, 16
    x = make_points(jax.random.PRNGKey(0), bs, H, W, C)
    out = jax.block_until_ready(lorentz_batchnorm2d(x, beta, gamma, c=c, eps=eps))
    ref = _reference(x.reshape(bs, H * W, C), beta, gamma[0],
                     c=c, eps=eps).reshape(bs, H, W, C)
    assert out.shape == x.shape and out.dtype == x.dtype
    assert jnp.allclose(out, ref, atol=1e-4, rtol=1e-4), "mismatch vs reference"

    # Multi-tile grid (accumulation happens via per-tile partials + jnp reduce).
    bs2, H2, W2 = 2, 32, 64
    x2 = make_points(jax.random.PRNGKey(1), bs2, H2, W2, C)
    out2 = jax.block_until_ready(
        lorentz_batchnorm2d(x2, beta, gamma, c=c, eps=eps, tile_rows=8))
    ref2 = _reference(x2.reshape(bs2, H2 * W2, C), beta, gamma[0],
                      c=c, eps=eps).reshape(bs2, H2, W2, C)
    assert jnp.allclose(out2, ref2, atol=1e-4, rtol=1e-4), "mismatch vs reference (tiled)"

    # Non-multiple-of-128 spatial size (exercises the padded + masked path).
    bs3, H3, W3 = 2, 7, 9
    x3 = make_points(jax.random.PRNGKey(2), bs3, H3, W3, C)
    out3 = jax.block_until_ready(lorentz_batchnorm2d(x3, beta, gamma, c=c, eps=eps))
    ref3 = _reference(x3.reshape(bs3, H3 * W3, C), beta, gamma[0],
                      c=c, eps=eps).reshape(bs3, H3, W3, C)
    assert jnp.allclose(out3, ref3, atol=1e-4, rtol=1e-4), "mismatch vs reference (padded)"

    print("KERNEL_OK")
</pallas_src>

<mosaic_0001>
module attributes {stable_mosaic.version = 11 : i64} {
  func.func @_var_kernel(%arg0: i32, %arg1: memref<1x5xf32, #tpu.memory_space<smem>>, %arg2: memref<2x4x2x128xf32, #tpu.memory_space<vmem>>, %arg3: memref<1x1x128xf32, #tpu.memory_space<vmem>>) attributes {dimension_semantics = [#tpu.dimension_semantics<parallel>], iteration_bounds = array<i64: 1>, scalar_prefetch = 0 : i64, scratch_operands = 0 : i64, tpu.core_type = #tpu.core_type<tc>, window_params = [{transform_indices = @transform_0, window_bounds = array<i64: 1, 5>}, {transform_indices = @transform_1, window_bounds = array<i64: 2, 4, 2, 128>}, {transform_indices = @transform_2, window_bounds = array<i64: 1, 1, 128>}]} {
    %c0 = arith.constant 0 : index
    %c0_0 = arith.constant 0 : index
    %c0_1 = arith.constant 0 : index
    %c0_2 = arith.constant 0 : index
    %0 = vector.load %arg2[%c0, %c0_0, %c0_1, %c0_2] : memref<2x4x2x128xf32, #tpu.memory_space<vmem>>, vector<2x1x2x128xf32>
    %1 = vector.shape_cast %0 : vector<2x1x2x128xf32> to vector<2x2x128xf32>
    %c0_3 = arith.constant 0 : index
    %c1 = arith.constant 1 : index
    %c0_4 = arith.constant 0 : index
    %c0_5 = arith.constant 0 : index
    %2 = vector.load %arg2[%c0_3, %c1, %c0_4, %c0_5] : memref<2x4x2x128xf32, #tpu.memory_space<vmem>>, vector<2x1x2x128xf32>
    %3 = vector.shape_cast %2 : vector<2x1x2x128xf32> to vector<2x2x128xf32>
    %c0_6 = arith.constant 0 : index
    %c2 = arith.constant 2 : index
    %c0_7 = arith.constant 0 : index
    %c0_8 = arith.constant 0 : index
    %4 = vector.load %arg2[%c0_6, %c2, %c0_7, %c0_8] : memref<2x4x2x128xf32, #tpu.memory_space<vmem>>, vector<2x1x2x128xf32>
    %5 = vector.shape_cast %4 : vector<2x1x2x128xf32> to vector<2x2x128xf32>
    %c0_9 = arith.constant 0 : index
    %c3 = arith.constant 3 : index
    %c0_10 = arith.constant 0 : index
    %c0_11 = arith.constant 0 : index
    %6 = vector.load %arg2[%c0_9, %c3, %c0_10, %c0_11] : memref<2x4x2x128xf32, #tpu.memory_space<vmem>>, vector<2x1x2x128xf32>
    %7 = vector.shape_cast %6 : vector<2x1x2x128xf32> to vector<2x2x128xf32>
    %c0_12 = arith.constant 0 : index
    %c0_13 = arith.constant 0 : index
    %8 = memref.load %arg1[%c0_12, %c0_13] : memref<1x5xf32, #tpu.memory_space<smem>>
    %c0_14 = arith.constant 0 : index
    %c1_15 = arith.constant 1 : index
    %9 = memref.load %arg1[%c0_14, %c1_15] : memref<1x5xf32, #tpu.memory_space<smem>>
    %c0_16 = arith.constant 0 : index
    %c2_17 = arith.constant 2 : index
    %10 = memref.load %arg1[%c0_16, %c2_17] : memref<1x5xf32, #tpu.memory_space<smem>>
    %c0_18 = arith.constant 0 : index
    %c3_19 = arith.constant 3 : index
    %11 = memref.load %arg1[%c0_18, %c3_19] : memref<1x5xf32, #tpu.memory_space<smem>>
    %12 = vector.broadcast %9 : f32 to vector<2x2x128xf32>
    %13 = arith.mulf %12, %3 : vector<2x2x128xf32>
    %14 = vector.broadcast %10 : f32 to vector<2x2x128xf32>
    %15 = arith.mulf %14, %5 : vector<2x2x128xf32>
    %16 = arith.addf %13, %15 : vector<2x2x128xf32>
    %17 = vector.broadcast %11 : f32 to vector<2x2x128xf32>
    %18 = arith.mulf %17, %7 : vector<2x2x128xf32>
    %19 = arith.addf %16, %18 : vector<2x2x128xf32>
    %20 = vector.broadcast %8 : f32 to vector<2x2x128xf32>
    %21 = arith.mulf %20, %1 : vector<2x2x128xf32>
    %22 = arith.subf %19, %21 : vector<2x2x128xf32>
    %cst = arith.constant -1.000000e+00 : f32
    %23 = vector.broadcast %cst : f32 to vector<2x2x128xf32>
    %24 = arith.mulf %22, %23 : vector<2x2x128xf32>
    %cst_20 = arith.constant 1.00000012 : f32
    %25 = vector.broadcast %cst_20 : f32 to vector<2x2x128xf32>
    %26 = arith.maximumf %24, %25 : vector<2x2x128xf32>
    %27 = arith.mulf %26, %26 : vector<2x2x128xf32>
    %cst_21 = arith.constant 1.000000e+00 : f32
    %28 = vector.broadcast %cst_21 : f32 to vector<2x2x128xf32>
    %29 = arith.subf %27, %28 : vector<2x2x128xf32>
    %30 = math.sqrt %29 : vector<2x2x128xf32>
    %31 = arith.addf %26, %30 : vector<2x2x128xf32>
    %32 = math.log %31 : vector<2x2x128xf32>
    %cst_22 = arith.constant 1.000000e+00 : f32
    %33 = vector.broadcast %cst_22 : f32 to vector<2x2x128xf32>
    %34 = arith.mulf %33, %32 : vector<2x2x128xf32>
    %cst_23 = arith.constant dense<0.000000e+00> : vector<128xf32>
    %35 = vector.multi_reduction <add>, %34, %cst_23 [0, 1] : vector<2x2x128xf32> to vector<128xf32>
    %36 = vector.shape_cast %35 : vector<128xf32> to vector<1x1x128xf32>
    %c0_24 = arith.constant 0 : index
    %c0_25 = arith.constant 0 : index
    %c0_26 = arith.constant 0 : index
    %37 = vector.load %arg3[%c0_24, %c0_25, %c0_26] : memref<1x1x128xf32, #tpu.memory_space<vmem>>, vector<1x1x128xf32>
    tpu.vector_store %arg3[%c0_24, %c0_25, %c0_26], %36 {strides = array<i32>} : memref<1x1x128xf32, #tpu.memory_space<vmem>>, vector<1x1x128xf32>,
    return
  }
  func.func @transform_0(%arg0: i32) -> (i32, i32) {
    %c0_i32 = arith.constant 0 : i32
    %c0_i32_0 = arith.constant 0 : i32
    %c0_i32_1 = arith.constant 0 : i32
    return %c0_i32, %c0_i32_0 : i32, i32
  }
  func.func @transform_1(%arg0: i32) -> (i32, i32, i32, i32) {
    %c0_i32 = arith.constant 0 : i32
    %c0_i32_0 = arith.constant 0 : i32
    %c0_i32_1 = arith.constant 0 : i32
    %c0_i32_2 = arith.constant 0 : i32
    return %c0_i32, %c0_i32_0, %arg0, %c0_i32_1 : i32, i32, i32, i32
  }
  func.func @transform_2(%arg0: i32) -> (i32, i32, i32) {
    %c0_i32 = arith.constant 0 : i32
    %c0_i32_0 = arith.constant 0 : i32
    %c0_i32_1 = arith.constant 0 : i32
    return %arg0, %c0_i32, %c0_i32_0 : i32, i32, i32
  }
}

</mosaic_0001>

<llo_original>
// kernel: tpu_custom_call.1
$region0: #{tpu_custom_call.1}
  #allocation0 [shape = 'u32[]', space=smem, size = 0x4, offset = 0x4, fixed_abs, tag = 'smem constant byte address 0x4 - core index']
  #allocation1 [shape = 'u32[144,128]{1,0:T(1,128)}', space=vmem, size = 0x12000, scoped, tag = 'internal scratch']
  %s0 = inlined_call_operand.hbm [shape: f32[1,5], index: 0, kind: input, shape index: {}]
  %s1 = inlined_call_operand.hbm [shape: f32[2,4,2,128], index: 1, kind: input, shape index: {}]
  %s2 = inlined_call_operand.hbm [shape: f32[1,1,128], index: 2, kind: output, shape index: {}]
  %s3 = sld [smem:[#allocation0]]
  $region26: #{tpu_custom_call.1} parent=0
    _
  %s5 = ssub.s32 1, %s3
  %s6 = scalar_select 0, %s5, %s3
  $region1: #{tpu_custom_call.1} parent=0
    #allocation2 [shape = 'u8[512]{0}', space=smem, size = 0x200, scoped, tag = 'input window, operand 0, single buffered']
    #allocation3 [shape = 's32[1]{0}', space=sflag, size = 0x4, scoped, tag = 'scoped memory for tpu_custom_call.1']
    #allocation4 [shape = 's32[1]{0}', space=sflag, size = 0x4, scoped, tag = 'scoped memory for tpu_custom_call.1']
    #allocation5 [shape = 's32[1]{0}', space=sflag, size = 0x4, scoped, tag = 'scoped memory for tpu_custom_call.1']
    #allocation6 [shape = 'u8[8192]{0}', space=vmem, size = 0x2000, scoped, tag = 'input window, operand 1, single buffered']
    #allocation7 [shape = 'u8[512]{0}', space=vmem, size = 0x400, scoped, tag = 'output window, operand 0, single buffered']
    %7 = vsyncpa [#allocation5], 0
    %8 = vsyncpa [#allocation3], 0
    %9 = vsyncpa [#allocation4], 0
    // Predicated region
    $region2: #{tpu_custom_call.1} parent=1 // pred_check
      _
    $region3: #{tpu_custom_call.1} parent=1 // pred_check_branch
      %11 = sbr.rel (0) target = $region5
    $region4: #{tpu_custom_call.1} parent=1 // pred_region
      %s13 = ssub.s32 16, 16
      %14 = vsyncadd [#allocation5], %s13
      %17 = dma.hbm_to_smem %s0, 16, [#allocation2], [#allocation5]
    $region5: #{tpu_custom_call.1} parent=1 // pred_fallthru
      _
    // Predicated region
    $region6: #{tpu_custom_call.1} parent=1 // pred_check
      _
    $region7: #{tpu_custom_call.1} parent=1 // pred_check_branch
      %19 = sbr.rel (0) target = $region9
    $region8: #{tpu_custom_call.1} parent=1 // pred_region
      %s21 = ssub.s32 256, 256
      %22 = vsyncadd [#allocation3], %s21
      %s23 = sshll.u32 [#allocation6], 4
      %s24 = int_to_ptr.vmem [resolvable:$true] %s23
      %29 = dma.hbm_to_vmem [thread:$0]  %s1, 256, %s24, [#allocation3], 32, 32, 2
    $region9: #{tpu_custom_call.1} parent=1 // pred_fallthru
      _
    // Predicated region
    $region10: #{tpu_custom_call.1} parent=1 // pred_check
      _
    $region11: #{tpu_custom_call.1} parent=1 // pred_check_branch
      %31 = sbr.rel (0) target = $region13
    $region12: #{tpu_custom_call.1} parent=1 // pred_region
      %32 = dma.done [#allocation5], 16
    $region13: #{tpu_custom_call.1} parent=1 // pred_fallthru
      _
    // Predicated region
    $region14: #{tpu_custom_call.1} parent=1 // pred_check
      _
    $region15: #{tpu_custom_call.1} parent=1 // pred_check_branch
      %34 = sbr.rel (0) target = $region17
    $region16: #{tpu_custom_call.1} parent=1 // pred_region
      %35 = dma.done [#allocation3], 256
    $region17: #{tpu_custom_call.1} parent=1 // pred_fallthru
      _
    %36 = sfence
    %v37 = vld [vmem:[#allocation6] sm:$0x3]
    %v38 = vld [vmem:[#allocation6 + $0x8] sm:$0x3]
    %s39 = scalar_lea.vmem [#allocation6], 2
    %v40 = vld [vmem:[%s39] sm:$0x3]
    %v41 = vld [vmem:[%s39 + $0x8] sm:$0x3]
    %s42 = scalar_lea.vmem [#allocation6], 4
    %v43 = vld [vmem:[%s42] sm:$0x3]
    %v44 = vld [vmem:[%s42 + $0x8] sm:$0x3]
    %s45 = scalar_lea.vmem [#allocation6], 6
    %v46 = vld [vmem:[%s45] sm:$0x3]
    %v47 = vld [vmem:[%s45 + $0x8] sm:$0x3]
    %s48 = sld [smem:[#allocation2]]
    %s49 = sld [smem:[#allocation2 + $0x1]]
    %s50 = sld [smem:[#allocation2 + $0x2]]
    %s51 = sld [smem:[#allocation2 + $0x3]]
    %v52 = vstv %s49
    %v53 = vmul.f32 %v52, %v40
    %v54 = vmul.f32 %v52, %v41
    %v55 = vstv %s50
    %v56 = vmul.f32 %v55, %v43
    %v57 = vmul.f32 %v55, %v44
    %v58 = vadd.f32 %v53, %v56
    %v59 = vadd.f32 %v54, %v57
    %v60 = vstv %s51
    %v61 = vmul.f32 %v60, %v46
    %v62 = vmul.f32 %v60, %v47
    %v63 = vadd.f32 %v58, %v61
    %v64 = vadd.f32 %v59, %v62
    %v65 = vstv %s48
    %v66 = vmul.f32 %v65, %v37
    %v67 = vmul.f32 %v65, %v38
    %v68 = vsub.f32 %v63, %v66
    %v69 = vsub.f32 %v64, %v67
    %v70 = vmul.f32 %v68, -1.0
    %v71 = vmul.f32 %v69, -1.0
    %v72 = vmax.f32 %v70, 1.0000001
    %v73 = vmax.f32 %v71, 1.0000001
    %v74 = vmul.f32 %v72, %v72
    %v75 = vmul.f32 %v73, %v73
    %v76 = vsub.f32 %v74, 1.0
    %v77 = vsub.f32 %v75, 1.0
    %v78 = vrsqrt.pop %v76
    %v79 = vmul.f32 %v76, %v78
    %vm80 = vcmp.eq.f32.partialorder %v76, inf
    %v81 = vsel %vm80, %v76, %v79
    %vm82 = vcmp.eq.f32.partialorder %v76, 0.0
    %v83 = vand.u32 %v76, 2147483648
    %v84 = vsel %vm82, %v83, %v81
    %v85 = vrsqrt.pop %v77
    %v86 = vmul.f32 %v77, %v85
    %vm87 = vcmp.eq.f32.partialorder %v77, inf
    %v88 = vsel %vm87, %v77, %v86
    %vm89 = vcmp.eq.f32.partialorder %v77, 0.0
    %v90 = vand.u32 %v77, 2147483648
    %v91 = vsel %vm89, %v90, %v88
    %v92 = vadd.f32 %v72, %v84
    %v93 = vadd.f32 %v73, %v91
    %v94 = vlog2.pop %v92
    %v95 = vmul.f32 %v94, 0.6931472
    %v96 = vlog2.pop %v93
    %v97 = vmul.f32 %v96, 0.6931472
    %vm98 = vcmask 1041408
    %v99 = vsel %vm98, %v95, 0.0
    %v100 = vsel %vm98, %v97, 0.0
    %v101 = vadd.f32 %v99, %v100
    %v102 = vrot.slane %v101, 4
    %v103 = vadd.f32 %v101, %v102
    %v104 = vrot.slane %v103, 2
    %v105 = vadd.f32 %v103, %v104
    %v106 = vrot.slane %v105, 1
    %v107 = vadd.f32 %v105, %v106
    %108 = vst [vmem:[#allocation7] sm:$0x1] %v107
    // Predicated region
    $region18: #{tpu_custom_call.1} parent=1 // pred_check
      _
    $region19: #{tpu_custom_call.1} parent=1 // pred_check_branch
      %110 = sbr.rel (0) target = $region21
    $region20: #{tpu_custom_call.1} parent=1 // pred_region
      %s112 = ssub.s32 16, 16
      %113 = vsyncadd [#allocation4], %s112
      %s115 = sshll.u32 [#allocation7], 4
      %s116 = int_to_ptr.vmem [resolvable:$true] %s115
      %118 = dma.vmem_to_hbm [thread:$0]  %s116, 16, %s2, [#allocation4]
    $region21: #{tpu_custom_call.1} parent=1 // pred_fallthru
      _
    // Predicated region
    $region22: #{tpu_custom_call.1} parent=1 // pred_check
      _
    $region23: #{tpu_custom_call.1} parent=1 // pred_check_branch
      %120 = sbr.rel (0) target = $region25
    $region24: #{tpu_custom_call.1} parent=1 // pred_region
      %121 = dma.done [#allocation4], 16
    $region25: #{tpu_custom_call.1} parent=1 // pred_fallthru
      _
    %122 = vsyncpa [#allocation3], 1
    %123 = vsyncpa [#allocation4], 1
    %124 = vsyncpa [#allocation5], 1

</llo_original>
